<compile_context>
chip_gen: v7x
topology: tpu7x:2x2x1
jax: 0.10.0
libtpu: 0.0.40
codegen_flags: <defaults>
</compile_context>

<pallas_src>
import functools
import operator

import jax
import jax.numpy as jnp
from jax.experimental import pallas as pl
from jax.experimental.pallas import tpu as pltpu


def _chunk_matmul(x, w):
    """x: (B, d) @ w: (d, n_out).  d == 1 is done as a VPU broadcast multiply."""
    if x.shape[1] == 1:
        return x * w                                     # (B,1)*(1,n) -> (B,n)
    return jnp.dot(x, w, preferred_element_type=jnp.float32)


def _make_fused_mlp_kernel(num_inputs, num_layers):
    """Kernel computing the whole MLP in one pass.

    Positional ref layout:
      [x_0 .. x_{I-1},                      # the un-concatenated inputs
       w0_0 .. w0_{I-1}, b0,                # layer 0 (weight split per input)
       w_1, b_1, ..., w_{L-1}, b_{L-1},     # remaining layers
       o_ref]                               # output
    """
    def kernel(*refs):
        idx = 0
        xs = [refs[idx + j][...] for j in range(num_inputs)]
        idx += num_inputs
        w0s = [refs[idx + j][...] for j in range(num_inputs)]
        idx += num_inputs
        b0 = refs[idx][...]
        idx += 1

        # Layer 0: concat fused away -> sum of per-input partial matmuls.
        h = functools.reduce(
            operator.add, [_chunk_matmul(x, w) for x, w in zip(xs, w0s)]
        ) + b0
        if num_layers > 1:
            h = jnp.maximum(h, 0.0)

        # Remaining layers, ReLU on all but the last (matches Net.forward).
        for layer in range(1, num_layers):
            w = refs[idx][...]
            b = refs[idx + 1][...]
            idx += 2
            h = jnp.dot(h, w, preferred_element_type=jnp.float32) + b
            if layer != num_layers - 1:
                h = jnp.maximum(h, 0.0)

        o_ref = refs[-1]
        o_ref[...] = h.astype(o_ref.dtype)

    return kernel


def init_params(layers, key):
    """Deterministic init mirroring Net.__init__:
       W_i ~ N(0,1) * sqrt(a/n_in) with a=1 for first layer else 2; b_i = 0.
       Weights stored as (n_in, n_out)."""
    params = []
    for i in range(len(layers) - 1):
        n_in, n_out = layers[i], layers[i + 1]
        a = 1.0 if i == 0 else 2.0
        key, sub = jax.random.split(key)
        w = jax.random.normal(sub, (n_in, n_out), jnp.float32) * jnp.sqrt(a / n_in)
        b = jnp.zeros((1, n_out), jnp.float32)
        params.append((w, b))
    return params


def prepare_kernel_params(params, input_dims):
    """One-time prep: split the first-layer weight row-wise per input (this is
       what fuses torch.cat into the kernel) and flatten all params."""
    w0, b0 = params[0]
    chunks, off = [], 0
    for d in input_dims:
        chunks.append(w0[off:off + d, :])
        off += d
    assert off == w0.shape[0]
    flat = list(chunks) + [b0]
    for w, b in params[1:]:
        flat += [w, b]
    return tuple(flat)


def net_forward(kernel_params, T_room, T_wall, T_out, door, timing):
    """Forward pass of Net as a single fused, gridless Pallas kernel."""
    inputs = (T_room, T_wall, T_out, door, timing)
    num_inputs = len(inputs)
    num_layers = (len(kernel_params) - num_inputs - 1) // 2 + 1
    batch = T_room.shape[0]
    n_out_last = kernel_params[-1].shape[-1]          # last bias is (1, n_out)

    args = list(inputs) + list(kernel_params)
    vmem_spec = pl.BlockSpec(memory_space=pltpu.MemorySpace.VMEM)
    kernel = _make_fused_mlp_kernel(num_inputs, num_layers)

    return pl.pallas_call(
        kernel,
        out_shape=jax.ShapeDtypeStruct((batch, n_out_last), jnp.float32),
        in_specs=[vmem_spec] * len(args),
        out_specs=vmem_spec,
    )(*args)


if __name__ == "__main__":
    key = jax.random.PRNGKey(0)

    # Small shapes consistent with the module's forward:
    # batch=8; the 5 concatenated feature widths sum to layers[0].
    batch = 8
    d_room, d_wall, d_out, d_door, d_timing = 4, 4, 1, 2, 5
    input_dims = (d_room, d_wall, d_out, d_door, d_timing)
    in_dim = sum(input_dims)                 # 16
    layers = [in_dim, 32, 32, 4]             # len(layers) >= 2

    kp, k1, k2, k3, k4, k5 = jax.random.split(key, 6)
    params = init_params(layers, kp)
    kernel_params = prepare_kernel_params(params, input_dims)

    T_room = jax.random.normal(k1, (batch, d_room), jnp.float32)
    T_wall = jax.random.normal(k2, (batch, d_wall), jnp.float32)
    T_out = jax.random.normal(k3, (batch, d_out), jnp.float32)
    door = jax.random.normal(k4, (batch, d_door), jnp.float32)
    timing = jax.random.normal(k5, (batch, d_timing), jnp.float32)

    out = net_forward(kernel_params, T_room, T_wall, T_out, door, timing)
    jax.block_until_ready(out)

    # Pure-JAX reference (same math as the PyTorch module, no Pallas).
    x_ref = jnp.concatenate((T_room, T_wall, T_out, door, timing), axis=1)
    for i, (w, b) in enumerate(params):
        x_ref = x_ref @ w + b
        if i != len(params) - 1:
            x_ref = jnp.maximum(x_ref, 0.0)

    assert out.shape == (batch, layers[-1])
    assert jnp.allclose(out, x_ref, atol=1e-5, rtol=1e-5)

    print("KERNEL_OK")
</pallas_src>

<mosaic_0001>
module attributes {stable_mosaic.version = 11 : i64} {
  func.func @kernel(%arg0: memref<8x4xf32, #tpu.memory_space<vmem>>, %arg1: memref<8x4xf32, #tpu.memory_space<vmem>>, %arg2: memref<8x1xf32, #tpu.memory_space<vmem>>, %arg3: memref<8x2xf32, #tpu.memory_space<vmem>>, %arg4: memref<8x5xf32, #tpu.memory_space<vmem>>, %arg5: memref<4x32xf32, #tpu.memory_space<vmem>>, %arg6: memref<4x32xf32, #tpu.memory_space<vmem>>, %arg7: memref<1x32xf32, #tpu.memory_space<vmem>>, %arg8: memref<2x32xf32, #tpu.memory_space<vmem>>, %arg9: memref<5x32xf32, #tpu.memory_space<vmem>>, %arg10: memref<1x32xf32, #tpu.memory_space<vmem>>, %arg11: memref<32x32xf32, #tpu.memory_space<vmem>>, %arg12: memref<1x32xf32, #tpu.memory_space<vmem>>, %arg13: memref<32x4xf32, #tpu.memory_space<vmem>>, %arg14: memref<1x4xf32, #tpu.memory_space<vmem>>, %arg15: memref<8x4xf32, #tpu.memory_space<vmem>>) attributes {dimension_semantics = [], scalar_prefetch = 0 : i64, scratch_operands = 0 : i64, tpu.core_type = #tpu.core_type<tc>} {
    %c0 = arith.constant 0 : index
    %c0_0 = arith.constant 0 : index
    %0 = vector.load %arg0[%c0, %c0_0] : memref<8x4xf32, #tpu.memory_space<vmem>>, vector<8x4xf32>
    %c0_1 = arith.constant 0 : index
    %c0_2 = arith.constant 0 : index
    %1 = vector.load %arg1[%c0_1, %c0_2] : memref<8x4xf32, #tpu.memory_space<vmem>>, vector<8x4xf32>
    %c0_3 = arith.constant 0 : index
    %c0_4 = arith.constant 0 : index
    %2 = vector.load %arg2[%c0_3, %c0_4] : memref<8x1xf32, #tpu.memory_space<vmem>>, vector<8x1xf32>
    %c0_5 = arith.constant 0 : index
    %c0_6 = arith.constant 0 : index
    %3 = vector.load %arg3[%c0_5, %c0_6] : memref<8x2xf32, #tpu.memory_space<vmem>>, vector<8x2xf32>
    %c0_7 = arith.constant 0 : index
    %c0_8 = arith.constant 0 : index
    %4 = vector.load %arg4[%c0_7, %c0_8] : memref<8x5xf32, #tpu.memory_space<vmem>>, vector<8x5xf32>
    %c0_9 = arith.constant 0 : index
    %c0_10 = arith.constant 0 : index
    %5 = vector.load %arg5[%c0_9, %c0_10] : memref<4x32xf32, #tpu.memory_space<vmem>>, vector<4x32xf32>
    %c0_11 = arith.constant 0 : index
    %c0_12 = arith.constant 0 : index
    %6 = vector.load %arg6[%c0_11, %c0_12] : memref<4x32xf32, #tpu.memory_space<vmem>>, vector<4x32xf32>
    %c0_13 = arith.constant 0 : index
    %c0_14 = arith.constant 0 : index
    %7 = vector.load %arg7[%c0_13, %c0_14] : memref<1x32xf32, #tpu.memory_space<vmem>>, vector<1x32xf32>
    %c0_15 = arith.constant 0 : index
    %c0_16 = arith.constant 0 : index
    %8 = vector.load %arg8[%c0_15, %c0_16] : memref<2x32xf32, #tpu.memory_space<vmem>>, vector<2x32xf32>
    %c0_17 = arith.constant 0 : index
    %c0_18 = arith.constant 0 : index
    %9 = vector.load %arg9[%c0_17, %c0_18] : memref<5x32xf32, #tpu.memory_space<vmem>>, vector<5x32xf32>
    %c0_19 = arith.constant 0 : index
    %c0_20 = arith.constant 0 : index
    %10 = vector.load %arg10[%c0_19, %c0_20] : memref<1x32xf32, #tpu.memory_space<vmem>>, vector<1x32xf32>
    %cst = arith.constant dense<0.000000e+00> : vector<8x32xf32>
    %11 = tpu.matmul %0, %5, %cst {dimension_numbers = #tpu.dot_dimension_numbers<[1], [0], [0], [1], [0, 0, 1, 1], [], []>} : vector<8x4xf32>, vector<4x32xf32>, vector<8x32xf32> -> vector<8x32xf32>
    %cst_21 = arith.constant dense<0.000000e+00> : vector<8x32xf32>
    %12 = tpu.matmul %1, %6, %cst_21 {dimension_numbers = #tpu.dot_dimension_numbers<[1], [0], [0], [1], [0, 0, 1, 1], [], []>} : vector<8x4xf32>, vector<4x32xf32>, vector<8x32xf32> -> vector<8x32xf32>
    %13 = vector.broadcast %2 : vector<8x1xf32> to vector<8x32xf32>
    %14 = vector.broadcast %7 : vector<1x32xf32> to vector<8x32xf32>
    %15 = arith.mulf %13, %14 : vector<8x32xf32>
    %cst_22 = arith.constant dense<0.000000e+00> : vector<8x32xf32>
    %16 = tpu.matmul %3, %8, %cst_22 {dimension_numbers = #tpu.dot_dimension_numbers<[1], [0], [0], [1], [0, 0, 1, 1], [], []>} : vector<8x2xf32>, vector<2x32xf32>, vector<8x32xf32> -> vector<8x32xf32>
    %cst_23 = arith.constant dense<0.000000e+00> : vector<8x32xf32>
    %17 = tpu.matmul %4, %9, %cst_23 {dimension_numbers = #tpu.dot_dimension_numbers<[1], [0], [0], [1], [0, 0, 1, 1], [], []>} : vector<8x5xf32>, vector<5x32xf32>, vector<8x32xf32> -> vector<8x32xf32>
    %18 = arith.addf %11, %12 : vector<8x32xf32>
    %19 = arith.addf %18, %15 : vector<8x32xf32>
    %20 = arith.addf %19, %16 : vector<8x32xf32>
    %21 = arith.addf %20, %17 : vector<8x32xf32>
    %22 = vector.broadcast %10 : vector<1x32xf32> to vector<8x32xf32>
    %23 = arith.addf %21, %22 : vector<8x32xf32>
    %cst_24 = arith.constant 0.000000e+00 : f32
    %24 = vector.broadcast %cst_24 : f32 to vector<8x32xf32>
    %25 = arith.maximumf %23, %24 : vector<8x32xf32>
    %c0_25 = arith.constant 0 : index
    %c0_26 = arith.constant 0 : index
    %26 = vector.load %arg11[%c0_25, %c0_26] : memref<32x32xf32, #tpu.memory_space<vmem>>, vector<32x32xf32>
    %c0_27 = arith.constant 0 : index
    %c0_28 = arith.constant 0 : index
    %27 = vector.load %arg12[%c0_27, %c0_28] : memref<1x32xf32, #tpu.memory_space<vmem>>, vector<1x32xf32>
    %cst_29 = arith.constant dense<0.000000e+00> : vector<8x32xf32>
    %28 = tpu.matmul %25, %26, %cst_29 {dimension_numbers = #tpu.dot_dimension_numbers<[1], [0], [0], [1], [0, 0, 1, 1], [], []>} : vector<8x32xf32>, vector<32x32xf32>, vector<8x32xf32> -> vector<8x32xf32>
    %29 = vector.broadcast %27 : vector<1x32xf32> to vector<8x32xf32>
    %30 = arith.addf %28, %29 : vector<8x32xf32>
    %cst_30 = arith.constant 0.000000e+00 : f32
    %31 = vector.broadcast %cst_30 : f32 to vector<8x32xf32>
    %32 = arith.maximumf %30, %31 : vector<8x32xf32>
    %c0_31 = arith.constant 0 : index
    %c0_32 = arith.constant 0 : index
    %33 = vector.load %arg13[%c0_31, %c0_32] : memref<32x4xf32, #tpu.memory_space<vmem>>, vector<32x4xf32>
    %c0_33 = arith.constant 0 : index
    %c0_34 = arith.constant 0 : index
    %34 = vector.load %arg14[%c0_33, %c0_34] : memref<1x4xf32, #tpu.memory_space<vmem>>, vector<1x4xf32>
    %cst_35 = arith.constant dense<0.000000e+00> : vector<8x4xf32>
    %35 = tpu.matmul %32, %33, %cst_35 {dimension_numbers = #tpu.dot_dimension_numbers<[1], [0], [0], [1], [0, 0, 1, 1], [], []>} : vector<8x32xf32>, vector<32x4xf32>, vector<8x4xf32> -> vector<8x4xf32>
    %36 = vector.broadcast %34 : vector<1x4xf32> to vector<8x4xf32>
    %37 = arith.addf %35, %36 : vector<8x4xf32>
    %c0_36 = arith.constant 0 : index
    %c0_37 = arith.constant 0 : index
    %38 = vector.load %arg15[%c0_36, %c0_37] : memref<8x4xf32, #tpu.memory_space<vmem>>, vector<8x4xf32>
    tpu.vector_store %arg15[%c0_36, %c0_37], %37 {strides = array<i32>} : memref<8x4xf32, #tpu.memory_space<vmem>>, vector<8x4xf32>,
    return
  }
}

</mosaic_0001>

<llo_original>
// kernel: tpu_custom_call.1
$region0: #{tpu_custom_call.1}
  #allocation0 [shape = 'u32[]', space=smem, size = 0x4, offset = 0x4, fixed_abs, tag = 'smem constant byte address 0x4 - core index']
  #allocation1 [shape = 'u32[144,128]{1,0:T(1,128)}', space=vmem, size = 0x12000, scoped, tag = 'internal scratch']
  %s0 = inlined_call_operand.vmem [shape: f32[8,4], index: 0, kind: input, shape index: {}]
  %s1 = inlined_call_operand.vmem [shape: f32[8,4], index: 1, kind: input, shape index: {}]
  %s2 = inlined_call_operand.vmem [shape: f32[8,1], index: 2, kind: input, shape index: {}]
  %s3 = inlined_call_operand.vmem [shape: f32[8,2], index: 3, kind: input, shape index: {}]
  %s4 = inlined_call_operand.vmem [shape: f32[8,5], index: 4, kind: input, shape index: {}]
  %s5 = inlined_call_operand.vmem [shape: f32[4,32], index: 5, kind: input, shape index: {}]
  %s6 = inlined_call_operand.vmem [shape: f32[4,32], index: 6, kind: input, shape index: {}]
  %s7 = inlined_call_operand.vmem [shape: f32[1,32], index: 7, kind: input, shape index: {}]
  %s8 = inlined_call_operand.vmem [shape: f32[2,32], index: 8, kind: input, shape index: {}]
  %s9 = inlined_call_operand.vmem [shape: f32[5,32], index: 9, kind: input, shape index: {}]
  %s10 = inlined_call_operand.vmem [shape: f32[1,32], index: 10, kind: input, shape index: {}]
  %s11 = inlined_call_operand.vmem [shape: f32[32,32], index: 11, kind: input, shape index: {}]
  %s12 = inlined_call_operand.vmem [shape: f32[1,32], index: 12, kind: input, shape index: {}]
  %s13 = inlined_call_operand.vmem [shape: f32[32,4], index: 13, kind: input, shape index: {}]
  %s14 = inlined_call_operand.vmem [shape: f32[1,4], index: 14, kind: input, shape index: {}]
  %s15 = inlined_call_operand.vmem [shape: f32[8,4], index: 15, kind: output, shape index: {}]
  %s16 = sld [smem:[#allocation0]]
  $region70: #{tpu_custom_call.1} parent=0
    _
  %s18 = ssub.s32 1, %s16
  %s19 = scalar_select 0, %s18, %s16
  // Predicated region
  $region2: #{tpu_custom_call.1} parent=0 // pred_check
    _
  $region3: #{tpu_custom_call.1} parent=0 // pred_check_branch
    %21 = sbr.rel (0) target = $region5
  $region4: #{tpu_custom_call.1} parent=0 // pred_region
    _
  $region5: #{tpu_custom_call.1} parent=0 // pred_fallthru
    _
  // Predicated region
  $region6: #{tpu_custom_call.1} parent=0 // pred_check
    _
  $region7: #{tpu_custom_call.1} parent=0 // pred_check_branch
    %23 = sbr.rel (0) target = $region9
  $region8: #{tpu_custom_call.1} parent=0 // pred_region
    _
  $region9: #{tpu_custom_call.1} parent=0 // pred_fallthru
    _
  // Predicated region
  $region10: #{tpu_custom_call.1} parent=0 // pred_check
    _
  $region11: #{tpu_custom_call.1} parent=0 // pred_check_branch
    %25 = sbr.rel (0) target = $region13
  $region12: #{tpu_custom_call.1} parent=0 // pred_region
    _
  $region13: #{tpu_custom_call.1} parent=0 // pred_fallthru
    _
  // Predicated region
  $region14: #{tpu_custom_call.1} parent=0 // pred_check
    _
  $region15: #{tpu_custom_call.1} parent=0 // pred_check_branch
    %27 = sbr.rel (0) target = $region17
  $region16: #{tpu_custom_call.1} parent=0 // pred_region
    _
  $region17: #{tpu_custom_call.1} parent=0 // pred_fallthru
    _
  // Predicated region
  $region18: #{tpu_custom_call.1} parent=0 // pred_check
    _
  $region19: #{tpu_custom_call.1} parent=0 // pred_check_branch
    %29 = sbr.rel (0) target = $region21
  $region20: #{tpu_custom_call.1} parent=0 // pred_region
    _
  $region21: #{tpu_custom_call.1} parent=0 // pred_fallthru
    _
  // Predicated region
  $region22: #{tpu_custom_call.1} parent=0 // pred_check
    _
  $region23: #{tpu_custom_call.1} parent=0 // pred_check_branch
    %31 = sbr.rel (0) target = $region25
  $region24: #{tpu_custom_call.1} parent=0 // pred_region
    _
  $region25: #{tpu_custom_call.1} parent=0 // pred_fallthru
    _
  // Predicated region
  $region26: #{tpu_custom_call.1} parent=0 // pred_check
    _
  $region27: #{tpu_custom_call.1} parent=0 // pred_check_branch
    %33 = sbr.rel (0) target = $region29
  $region28: #{tpu_custom_call.1} parent=0 // pred_region
    _
  $region29: #{tpu_custom_call.1} parent=0 // pred_fallthru
    _
  // Predicated region
  $region30: #{tpu_custom_call.1} parent=0 // pred_check
    _
  $region31: #{tpu_custom_call.1} parent=0 // pred_check_branch
    %35 = sbr.rel (0) target = $region33
  $region32: #{tpu_custom_call.1} parent=0 // pred_region
    _
  $region33: #{tpu_custom_call.1} parent=0 // pred_fallthru
    _
  // Predicated region
  $region34: #{tpu_custom_call.1} parent=0 // pred_check
    _
  $region35: #{tpu_custom_call.1} parent=0 // pred_check_branch
    %37 = sbr.rel (0) target = $region37
  $region36: #{tpu_custom_call.1} parent=0 // pred_region
    _
  $region37: #{tpu_custom_call.1} parent=0 // pred_fallthru
    _
  // Predicated region
  $region38: #{tpu_custom_call.1} parent=0 // pred_check
    _
  $region39: #{tpu_custom_call.1} parent=0 // pred_check_branch
    %39 = sbr.rel (0) target = $region41
  $region40: #{tpu_custom_call.1} parent=0 // pred_region
    _
  $region41: #{tpu_custom_call.1} parent=0 // pred_fallthru
    _
  // Predicated region
  $region42: #{tpu_custom_call.1} parent=0 // pred_check
    _
  $region43: #{tpu_custom_call.1} parent=0 // pred_check_branch
    %41 = sbr.rel (0) target = $region45
  $region44: #{tpu_custom_call.1} parent=0 // pred_region
    _
  $region45: #{tpu_custom_call.1} parent=0 // pred_fallthru
    _
  // Predicated region
  $region46: #{tpu_custom_call.1} parent=0 // pred_check
    _
  $region47: #{tpu_custom_call.1} parent=0 // pred_check_branch
    %43 = sbr.rel (0) target = $region49
  $region48: #{tpu_custom_call.1} parent=0 // pred_region
    _
  $region49: #{tpu_custom_call.1} parent=0 // pred_fallthru
    _
  // Predicated region
  $region50: #{tpu_custom_call.1} parent=0 // pred_check
    _
  $region51: #{tpu_custom_call.1} parent=0 // pred_check_branch
    %45 = sbr.rel (0) target = $region53
  $region52: #{tpu_custom_call.1} parent=0 // pred_region
    _
  $region53: #{tpu_custom_call.1} parent=0 // pred_fallthru
    _
  // Predicated region
  $region54: #{tpu_custom_call.1} parent=0 // pred_check
    _
  $region55: #{tpu_custom_call.1} parent=0 // pred_check_branch
    %47 = sbr.rel (0) target = $region57
  $region56: #{tpu_custom_call.1} parent=0 // pred_region
    _
  $region57: #{tpu_custom_call.1} parent=0 // pred_fallthru
    _
  // Predicated region
  $region58: #{tpu_custom_call.1} parent=0 // pred_check
    _
  $region59: #{tpu_custom_call.1} parent=0 // pred_check_branch
    %49 = sbr.rel (0) target = $region61
  $region60: #{tpu_custom_call.1} parent=0 // pred_region
    _
  $region61: #{tpu_custom_call.1} parent=0 // pred_fallthru
    _
  %v50 = vld [vmem:[%s0] sm:$0xff]
  %v51 = vld [vmem:[%s1] sm:$0xff]
  %v52 = vld [vmem:[%s2] sm:$0xff]
  %v53 = vld [vmem:[%s3] sm:$0xff]
  %v54 = vld [vmem:[%s4] sm:$0xff]
  %v55 = vld [vmem:[%s5] sm:$0xf]
  %v56 = vld [vmem:[%s6] sm:$0xf]
  %v57 = vld [vmem:[%s7] sm:$0x1]
  %v58 = vld [vmem:[%s8] sm:$0x3]
  %v59 = vld [vmem:[%s9] sm:$0x1f]
  %v60 = vld [vmem:[%s10] sm:$0x1]
  %vm61 = vcmask 31744
  %v63 = vsel %vm61, %v51, 0
  %vm65 = vcmask 1043456
  %v67 = vsel %vm65, %v56, 0
  %69 = vmatprep.subr.mxu0 0.0
  %70 = vmatpush1.msra.mxu0 %v67
  %71 = vmatprep.subr.mxu0 0.0
  %72 = vmatpush1.msra.mxu0 0.0
  %73 = vmatprep.subr.mxu0 0.0
  %74 = vmatpush1.msra.mxu0 0.0
  %75 = vmatprep.subr.mxu0 0.0
  %76 = vmatpush1.msra.mxu0 0.0
  %77 = vmatprep.subr.mxu0 0.0
  %78 = vmatpush1.msra.mxu0 0.0
  %79 = vmatprep.subr.mxu0 0.0
  %80 = vmatpush1.msra.mxu0 0.0
  %81 = vmatprep.subr.mxu0 0.0
  %82 = vmatpush1.msra.mxu0 0.0
  %83 = vmatprep.subr.mxu0 0.0
  %84 = vmatpush1.msra.mxu0 0.0
  %85 = vmatprep.subr.mxu0 0.0
  %86 = vmatpush1.msra.mxu0 0.0
  %87 = vmatprep.subr.mxu0 0.0
  %88 = vmatpush1.msra.mxu0 0.0
  %89 = vmatprep.subr.mxu0 0.0
  %90 = vmatpush1.msra.mxu0 0.0
  %91 = vmatprep.subr.mxu0 0.0
  %92 = vmatpush1.msra.mxu0 0.0
  %93 = vmatprep.subr.mxu0 0.0
  %94 = vmatpush1.msra.mxu0 0.0
  %95 = vmatprep.subr.mxu0 0.0
  %96 = vmatpush1.msra.mxu0 0.0
  %97 = vmatprep.subr.mxu0 0.0
  %98 = vmatpush1.msra.mxu0 0.0
  %99 = vmatprep.subr.mxu0 0.0
  %100 = vmatpush1.msra.mxu0 0.0
  %101 = vmatprep.subr.mxu0 0.0
  %102 = vmatpush1.msra.mxu0 0.0
  %103 = vmatprep.subr.mxu0 0.0
  %104 = vmatpush1.msra.mxu0 0.0
  %105 = vmatprep.subr.mxu0 0.0
  %106 = vmatpush1.msra.mxu0 0.0
  %107 = vmatprep.subr.mxu0 0.0
  %108 = vmatpush1.msra.mxu0 0.0
  %109 = vmatprep.subr.mxu0 0.0
  %110 = vmatpush1.msra.mxu0 0.0
  %111 = vmatprep.subr.mxu0 0.0
  %112 = vmatpush1.msra.mxu0 0.0
  %113 = vmatprep.subr.mxu0 0.0
  %114 = vmatpush1.msra.mxu0 0.0
  %115 = vmatprep.subr.mxu0 0.0
  %116 = vmatpush1.msra.mxu0 0.0
  %117 = vmatprep.subr.mxu0 0.0
  %118 = vmatpush1.msra.mxu0 0.0
  %119 = vmatprep.subr.mxu0 0.0
  %120 = vmatpush1.msra.mxu0 0.0
  %121 = vmatprep.subr.mxu0 0.0
  %122 = vmatpush1.msra.mxu0 0.0
  %123 = vmatprep.subr.mxu0 0.0
  %124 = vmatpush1.msra.mxu0 0.0
  %125 = vmatprep.subr.mxu0 0.0
  %126 = vmatpush1.msra.mxu0 0.0
  %127 = vmatprep.subr.mxu0 0.0
  %128 = vmatpush1.msra.mxu0 0.0
  %129 = vmatprep.subr.mxu0 0.0
  %130 = vmatpush1.msra.mxu0 0.0
  %131 = vmatprep.subr.mxu0 0.0
  %132 = vmatpush1.msra.mxu0 0.0
  %133 = vmatprep.mubr.f32.mxu0 0.0
  %134 = vmatmul.mubr.f32.gmra.mrb[0].mxu0 %v63
  %v135 = vpop.f32.mrb[0].mxu0
  %v136 = vadd.f32 0.0, %v135
  %v137 = vpop.f32.mrb[0].mxu0
  %138 = vdwg.mxu0
  %140 = vset.pattern.permute.xlu0 0
  %141 = vperm.xlu0 %140, %v52
  %v142 = vpop.permute.xlu0 %141
  %v145 = vlaneseq
  %v146 = vshrl.u32 %v145, 7
  %v147 = vsub.s32 0, %v146
  %v148 = vrot.slane %v57, %v147
  %v150 = vmul.f32 %v142, %v148
  %vm151 = vcmask 15360
  %v153 = vsel %vm151, %v53, 0
  %vm155 = vcmask 1041408
  %v157 = vsel %vm155, %v58, 0
  %159 = vmatprep.subr.mxu0 0.0
  %160 = vmatpush1.msra.mxu0 %v157
  %161 = vmatprep.subr.mxu0 0.0
  %162 = vmatpush1.msra.mxu0 0.0
  %163 = vmatprep.subr.mxu0 0.0
  %164 = vmatpush1.msra.mxu0 0.0
  %165 = vmatprep.subr.mxu0 0.0
  %166 = vmatpush1.msra.mxu0 0.0
  %167 = vmatprep.subr.mxu0 0.0
  %168 = vmatpush1.msra.mxu0 0.0
  %169 = vmatprep.subr.mxu0 0.0
  %170 = vmatpush1.msra.mxu0 0.0
  %171 = vmatprep.subr.mxu0 0.0
  %172 = vmatpush1.msra.mxu0 0.0
  %173 = vmatprep.subr.mxu0 0.0
  %174 = vmatpush1.msra.mxu0 0.0
  %175 = vmatprep.subr.mxu0 0.0
  %176 = vmatpush1.msra.mxu0 0.0
  %177 = vmatprep.subr.mxu0 0.0
  %178 = vmatpush1.msra.mxu0 0.0
  %179 = vmatprep.subr.mxu0 0.0
  %180 = vmatpush1.msra.mxu0 0.0
  %181 = vmatprep.subr.mxu0 0.0
  %182 = vmatpush1.msra.mxu0 0.0
  %183 = vmatprep.subr.mxu0 0.0
  %184 = vmatpush1.msra.mxu0 0.0
  %185 = vmatprep.subr.mxu0 0.0
  %186 = vmatpush1.msra.mxu0 0.0
  %187 = vmatprep.subr.mxu0 0.0
  %188 = vmatpush1.msra.mxu0 0.0
  %189 = vmatprep.subr.mxu0 0.0
  %190 = vmatpush1.msra.mxu0 0.0
  %191 = vmatprep.subr.mxu0 0.0
  %192 = vmatpush1.msra.mxu0 0.0
  %193 = vmatprep.subr.mxu0 0.0
  %194 = vmatpush1.msra.mxu0 0.0
  %195 = vmatprep.subr.mxu0 0.0
  %196 = vmatpush1.msra.mxu0 0.0
  %197 = vmatprep.subr.mxu0 0.0
  %198 = vmatpush1.msra.mxu0 0.0
  %199 = vmatprep.subr.mxu0 0.0
  %200 = vmatpush1.msra.mxu0 0.0
  %201 = vmatprep.subr.mxu0 0.0
  %202 = vmatpush1.msra.mxu0 0.0
  %203 = vmatprep.subr.mxu0 0.0
  %204 = vmatpush1.msra.mxu0 0.0
  %205 = vmatprep.subr.mxu0 0.0
  %206 = vmatpush1.msra.mxu0 0.0
  %207 = vmatprep.subr.mxu0 0.0
  %208 = vmatpush1.msra.mxu0 0.0
  %209 = vmatprep.subr.mxu0 0.0
  %210 = vmatpush1.msra.mxu0 0.0
  %211 = vmatprep.subr.mxu0 0.0
  %212 = vmatpush1.msra.mxu0 0.0
  %213 = vmatprep.subr.mxu0 0.0
  %214 = vmatpush1.msra.mxu0 0.0
  %215 = vmatprep.subr.mxu0 0.0
  %216 = vmatpush1.msra.mxu0 0.0
  %217 = vmatprep.subr.mxu0 0.0
  %218 = vmatpush1.msra.mxu0 0.0
  %219 = vmatprep.subr.mxu0 0.0
  %220 = vmatpush1.msra.mxu0 0.0
  %221 = vmatprep.subr.mxu0 0.0
  %222 = vmatpush1.msra.mxu0 0.0
  %223 = vmatprep.mubr.f32.mxu0 0.0
  %224 = vmatmul.mubr.f32.gmra.mrb[0].mxu0 %v153
  %v225 = vpop.f32.mrb[0].mxu0
  %v226 = vadd.f32 0.0, %v225
  %v227 = vpop.f32.mrb[0].mxu0
  %228 = vdwg.mxu0
  %vm229 = vcmask 39936
  %v231 = vsel %vm229, %v54, 0
  %vm233 = vcmask 1044480
  %v235 = vsel %vm233, %v59, 0
  %237 = vmatprep.subr.mxu0 0.0
  %238 = vmatpush1.msra.mxu0 %v235
  %239 = vmatprep.subr.mxu0 0.0
  %240 = vmatpush1.msra.mxu0 0.0
  %241 = vmatprep.subr.mxu0 0.0
  %242 = vmatpush1.msra.mxu0 0.0
  %243 = vmatprep.subr.mxu0 0.0
  %244 = vmatpush1.msra.mxu0 0.0
  %245 = vmatprep.subr.mxu0 0.0
  %246 = vmatpush1.msra.mxu0 0.0
  %247 = vmatprep.subr.mxu0 0.0
  %248 = vmatpush1.msra.mxu0 0.0
  %249 = vmatprep.subr.mxu0 0.0
  %250 = vmatpush1.msra.mxu0 0.0
  %251 = vmatprep.subr.mxu0 0.0
  %252 = vmatpush1.msra.mxu0 0.0
  %253 = vmatprep.subr.mxu0 0.0
  %254 = vmatpush1.msra.mxu0 0.0
  %255 = vmatprep.subr.mxu0 0.0
  %256 = vmatpush1.msra.mxu0 0.0
  %257 = vmatprep.subr.mxu0 0.0
  %258 = vmatpush1.msra.mxu0 0.0
  %259 = vmatprep.subr.mxu0 0.0
  %260 = vmatpush1.msra.mxu0 0.0
  %261 = vmatprep.subr.mxu0 0.0
  %262 = vmatpush1.msra.mxu0 0.0
  %263 = vmatprep.subr.mxu0 0.0
  %264 = vmatpush1.msra.mxu0 0.0
  %265 = vmatprep.subr.mxu0 0.0
  %266 = vmatpush1.msra.mxu0 0.0
  %267 = vmatprep.subr.mxu0 0.0
  %268 = vmatpush1.msra.mxu0 0.0
  %269 = vmatprep.subr.mxu0 0.0
  %270 = vmatpush1.msra.mxu0 0.0
  %271 = vmatprep.subr.mxu0 0.0
  %272 = vmatpush1.msra.mxu0 0.0
  %273 = vmatprep.subr.mxu0 0.0
  %274 = vmatpush1.msra.mxu0 0.0
  %275 = vmatprep.subr.mxu0 0.0
  %276 = vmatpush1.msra.mxu0 0.0
  %277 = vmatprep.subr.mxu0 0.0
  %278 = vmatpush1.msra.mxu0 0.0
  %279 = vmatprep.subr.mxu0 0.0
  %280 = vmatpush1.msra.mxu0 0.0
  %281 = vmatprep.subr.mxu0 0.0
  %282 = vmatpush1.msra.mxu0 0.0
  %283 = vmatprep.subr.mxu0 0.0
  %284 = vmatpush1.msra.mxu0 0.0
  %285 = vmatprep.subr.mxu0 0.0
  %286 = vmatpush1.msra.mxu0 0.0
  %287 = vmatprep.subr.mxu0 0.0
  %288 = vmatpush1.msra.mxu0 0.0
  %289 = vmatprep.subr.mxu0 0.0
  %290 = vmatpush1.msra.mxu0 0.0
  %291 = vmatprep.subr.mxu0 0.0
  %292 = vmatpush1.msra.mxu0 0.0
  %293 = vmatprep.subr.mxu0 0.0
  %294 = vmatpush1.msra.mxu0 0.0
  %295 = vmatprep.subr.mxu0 0.0
  %296 = vmatpush1.msra.mxu0 0.0
  %297 = vmatprep.subr.mxu0 0.0
  %298 = vmatpush1.msra.mxu0 0.0
  %299 = vmatprep.subr.mxu0 0.0
  %300 = vmatpush1.msra.mxu0 0.0
  %301 = vmatprep.mubr.f32.mxu0 0.0
  %302 = vmatmul.mubr.f32.gmra.mrb[0].mxu0 %v231
  %v303 = vpop.f32.mrb[0].mxu0
  %v304 = vadd.f32 0.0, %v303
  %v305 = vpop.f32.mrb[0].mxu0
  %306 = vdwg.mxu0
  %v308 = vsel %vm61, %v50, 0
  %v311 = vsel %vm65, %v55, 0
  %313 = vmatprep.subr.mxu0 0.0
  %314 = vmatpush1.msra.mxu0 %v311
  %315 = vmatprep.subr.mxu0 0.0
  %316 = vmatpush1.msra.mxu0 0.0
  %317 = vmatprep.subr.mxu0 0.0
  %318 = vmatpush1.msra.mxu0 0.0
  %319 = vmatprep.subr.mxu0 0.0
  %320 = vmatpush1.msra.mxu0 0.0
  %321 = vmatprep.subr.mxu0 0.0
  %322 = vmatpush1.msra.mxu0 0.0
  %323 = vmatprep.subr.mxu0 0.0
  %324 = vmatpush1.msra.mxu0 0.0
  %325 = vmatprep.subr.mxu0 0.0
  %326 = vmatpush1.msra.mxu0 0.0
  %327 = vmatprep.subr.mxu0 0.0
  %328 = vmatpush1.msra.mxu0 0.0
  %329 = vmatprep.subr.mxu0 0.0
  %330 = vmatpush1.msra.mxu0 0.0
  %331 = vmatprep.subr.mxu0 0.0
  %332 = vmatpush1.msra.mxu0 0.0
  %333 = vmatprep.subr.mxu0 0.0
  %334 = vmatpush1.msra.mxu0 0.0
  %335 = vmatprep.subr.mxu0 0.0
  %336 = vmatpush1.msra.mxu0 0.0
  %337 = vmatprep.subr.mxu0 0.0
  %338 = vmatpush1.msra.mxu0 0.0
  %339 = vmatprep.subr.mxu0 0.0
  %340 = vmatpush1.msra.mxu0 0.0
  %341 = vmatprep.subr.mxu0 0.0
  %342 = vmatpush1.msra.mxu0 0.0
  %343 = vmatprep.subr.mxu0 0.0
  %344 = vmatpush1.msra.mxu0 0.0
  %345 = vmatprep.subr.mxu0 0.0
  %346 = vmatpush1.msra.mxu0 0.0
  %347 = vmatprep.subr.mxu0 0.0
  %348 = vmatpush1.msra.mxu0 0.0
  %349 = vmatprep.subr.mxu0 0.0
  %350 = vmatpush1.msra.mxu0 0.0
  %351 = vmatprep.subr.mxu0 0.0
  %352 = vmatpush1.msra.mxu0 0.0
  %353 = vmatprep.subr.mxu0 0.0
  %354 = vmatpush1.msra.mxu0 0.0
  %355 = vmatprep.subr.mxu0 0.0
  %356 = vmatpush1.msra.mxu0 0.0
  %357 = vmatprep.subr.mxu0 0.0
  %358 = vmatpush1.msra.mxu0 0.0
  %359 = vmatprep.subr.mxu0 0.0
  %360 = vmatpush1.msra.mxu0 0.0
  %361 = vmatprep.subr.mxu0 0.0
  %362 = vmatpush1.msra.mxu0 0.0
  %363 = vmatprep.subr.mxu0 0.0
  %364 = vmatpush1.msra.mxu0 0.0
  %365 = vmatprep.subr.mxu0 0.0
  %366 = vmatpush1.msra.mxu0 0.0
  %367 = vmatprep.subr.mxu0 0.0
  %368 = vmatpush1.msra.mxu0 0.0
  %369 = vmatprep.subr.mxu0 0.0
  %370 = vmatpush1.msra.mxu0 0.0
  %371 = vmatprep.subr.mxu0 0.0
  %372 = vmatpush1.msra.mxu0 0.0
  %373 = vmatprep.subr.mxu0 0.0
  %374 = vmatpush1.msra.mxu0 0.0
  %375 = vmatprep.subr.mxu0 0.0
  %376 = vmatpush1.msra.mxu0 0.0
  %377 = vmatprep.mubr.f32.mxu0 0.0
  %378 = vmatmul.mubr.f32.gmra.mrb[0].mxu0 %v308
  %v379 = vpop.f32.mrb[0].mxu0
  %v380 = vadd.f32 %v136, %v379
  %v381 = vpop.f32.mrb[0].mxu0
  %382 = vdwg.mxu0
  %v383 = vadd.f32 %v380, %v150
  %v384 = vadd.f32 %v383, %v226
  %v385 = vadd.f32 %v384, %v304
  %v387 = vlaneseq
  %v388 = vshrl.u32 %v387, 7
  %v389 = vsub.s32 0, %v388
  %v390 = vrot.slane %v60, %v389
  %v392 = vadd.f32 %v385, %v390
  %v393 = vmax.f32 %v392, 0.0
  %v394 = vld [vmem:[%s11] sm:$0xff]
  %v395 = vld [vmem:[%s11 + $0x8] sm:$0xff]
  %v396 = vld [vmem:[%s11 + $0x10] sm:$0xff]
  %v397 = vld [vmem:[%s11 + $0x18] sm:$0xff]
  %v398 = vld [vmem:[%s12] sm:$0x1]
  %v400 = vlaneseq
  %v401 = vshrl.u32 %v400, 7
  %v402 = vsub.s32 0, %v401
  %v403 = vrot.slane %v398, %v402
  %vm405 = vcmask 261120
  %v407 = vsel %vm405, %v393, 0
  %409 = vmatprep.subr.mxu0 0.0
  %410 = vmatpush1.msra.mxu0 %v394
  %411 = vmatprep.subr.mxu0 0.0
  %412 = vmatpush1.msra.mxu0 %v395
  %413 = vmatprep.subr.mxu0 0.0
  %414 = vmatpush1.msra.mxu0 %v396
  %415 = vmatprep.subr.mxu0 0.0
  %416 = vmatpush1.msra.mxu0 %v397
  %417 = vmatprep.subr.mxu0 0.0
  %418 = vmatpush1.msra.mxu0 0.0
  %419 = vmatprep.subr.mxu0 0.0
  %420 = vmatpush1.msra.mxu0 0.0
  %421 = vmatprep.subr.mxu0 0.0
  %422 = vmatpush1.msra.mxu0 0.0
  %423 = vmatprep.subr.mxu0 0.0
  %424 = vmatpush1.msra.mxu0 0.0
  %425 = vmatprep.subr.mxu0 0.0
  %426 = vmatpush1.msra.mxu0 0.0
  %427 = vmatprep.subr.mxu0 0.0
  %428 = vmatpush1.msra.mxu0 0.0
  %429 = vmatprep.subr.mxu0 0.0
  %430 = vmatpush1.msra.mxu0 0.0
  %431 = vmatprep.subr.mxu0 0.0
  %432 = vmatpush1.msra.mxu0 0.0
  %433 = vmatprep.subr.mxu0 0.0
  %434 = vmatpush1.msra.mxu0 0.0
  %435 = vmatprep.subr.mxu0 0.0
  %436 = vmatpush1.msra.mxu0 0.0
  %437 = vmatprep.subr.mxu0 0.0
  %438 = vmatpush1.msra.mxu0 0.0
  %439 = vmatprep.subr.mxu0 0.0
  %440 = vmatpush1.msra.mxu0 0.0
  %441 = vmatprep.subr.mxu0 0.0
  %442 = vmatpush1.msra.mxu0 0.0
  %443 = vmatprep.subr.mxu0 0.0
  %444 = vmatpush1.msra.mxu0 0.0
  %445 = vmatprep.subr.mxu0 0.0
  %446 = vmatpush1.msra.mxu0 0.0
  %447 = vmatprep.subr.mxu0 0.0
  %448 = vmatpush1.msra.mxu0 0.0
  %449 = vmatprep.subr.mxu0 0.0
  %450 = vmatpush1.msra.mxu0 0.0
  %451 = vmatprep.subr.mxu0 0.0
  %452 = vmatpush1.msra.mxu0 0.0
  %453 = vmatprep.subr.mxu0 0.0
  %454 = vmatpush1.msra.mxu0 0.0
  %455 = vmatprep.subr.mxu0 0.0
  %456 = vmatpush1.msra.mxu0 0.0
  %457 = vmatprep.subr.mxu0 0.0
  %458 = vmatpush1.msra.mxu0 0.0
  %459 = vmatprep.subr.mxu0 0.0
  %460 = vmatpush1.msra.mxu0 0.0
  %461 = vmatprep.subr.mxu0 0.0
  %462 = vmatpush1.msra.mxu0 0.0
  %463 = vmatprep.subr.mxu0 0.0
  %464 = vmatpush1.msra.mxu0 0.0
  %465 = vmatprep.subr.mxu0 0.0
  %466 = vmatpush1.msra.mxu0 0.0
  %467 = vmatprep.subr.mxu0 0.0
  %468 = vmatpush1.msra.mxu0 0.0
  %469 = vmatprep.subr.mxu0 0.0
  %470 = vmatpush1.msra.mxu0 0.0
  %471 = vmatprep.subr.mxu0 0.0
  %472 = vmatpush1.msra.mxu0 0.0
  %473 = vmatprep.mubr.f32.mxu0 0.0
  %474 = vmatmul.mubr.f32.gmra.mrb[0].mxu0 %v407
  %v475 = vpop.f32.mrb[0].mxu0
  %v476 = vadd.f32 %v403, %v475
  %v477 = vpop.f32.mrb[0].mxu0
  %478 = vdwg.mxu0
  %v479 = vmax.f32 %v476, 0.0
  %v480 = vld [vmem:[%s13] sm:$0xff]
  %v481 = vld [vmem:[%s13 + $0x8] sm:$0xff]
  %v482 = vld [vmem:[%s13 + $0x10] sm:$0xff]
  %v483 = vld [vmem:[%s13 + $0x18] sm:$0xff]
  %v484 = vld [vmem:[%s14] sm:$0x1]
  %v486 = vlaneseq
  %v487 = vshrl.u32 %v486, 7
  %v488 = vsub.s32 0, %v487
  %v489 = vrot.slane %v484, %v488
  %v492 = vsel %vm405, %v479, 0
  %494 = vmatprep.subr.mxu0 0.0
  %495 = vmatpush1.msra.mxu0 %v480
  %496 = vmatprep.subr.mxu0 0.0
  %497 = vmatpush1.msra.mxu0 %v481
  %498 = vmatprep.subr.mxu0 0.0
  %499 = vmatpush1.msra.mxu0 %v482
  %500 = vmatprep.subr.mxu0 0.0
  %501 = vmatpush1.msra.mxu0 %v483
  %502 = vmatprep.subr.mxu0 0.0
  %503 = vmatpush1.msra.mxu0 0.0
  %504 = vmatprep.subr.mxu0 0.0
  %505 = vmatpush1.msra.mxu0 0.0
  %506 = vmatprep.subr.mxu0 0.0
  %507 = vmatpush1.msra.mxu0 0.0
  %508 = vmatprep.subr.mxu0 0.0
  %509 = vmatpush1.msra.mxu0 0.0
  %510 = vmatprep.subr.mxu0 0.0
  %511 = vmatpush1.msra.mxu0 0.0
  %512 = vmatprep.subr.mxu0 0.0
  %513 = vmatpush1.msra.mxu0 0.0
  %514 = vmatprep.subr.mxu0 0.0
  %515 = vmatpush1.msra.mxu0 0.0
  %516 = vmatprep.subr.mxu0 0.0
  %517 = vmatpush1.msra.mxu0 0.0
  %518 = vmatprep.subr.mxu0 0.0
  %519 = vmatpush1.msra.mxu0 0.0
  %520 = vmatprep.subr.mxu0 0.0
  %521 = vmatpush1.msra.mxu0 0.0
  %522 = vmatprep.subr.mxu0 0.0
  %523 = vmatpush1.msra.mxu0 0.0
  %524 = vmatprep.subr.mxu0 0.0
  %525 = vmatpush1.msra.mxu0 0.0
  %526 = vmatprep.subr.mxu0 0.0
  %527 = vmatpush1.msra.mxu0 0.0
  %528 = vmatprep.subr.mxu0 0.0
  %529 = vmatpush1.msra.mxu0 0.0
  %530 = vmatprep.subr.mxu0 0.0
  %531 = vmatpush1.msra.mxu0 0.0
  %532 = vmatprep.subr.mxu0 0.0
  %533 = vmatpush1.msra.mxu0 0.0
  %534 = vmatprep.subr.mxu0 0.0
  %535 = vmatpush1.msra.mxu0 0.0
  %536 = vmatprep.subr.mxu0 0.0
  %537 = vmatpush1.msra.mxu0 0.0
  %538 = vmatprep.subr.mxu0 0.0
  %539 = vmatpush1.msra.mxu0 0.0
  %540 = vmatprep.subr.mxu0 0.0
  %541 = vmatpush1.msra.mxu0 0.0
  %542 = vmatprep.subr.mxu0 0.0
  %543 = vmatpush1.msra.mxu0 0.0
  %544 = vmatprep.subr.mxu0 0.0
  %545 = vmatpush1.msra.mxu0 0.0
  %546 = vmatprep.subr.mxu0 0.0
  %547 = vmatpush1.msra.mxu0 0.0
  %548 = vmatprep.subr.mxu0 0.0
  %549 = vmatpush1.msra.mxu0 0.0
  %550 = vmatprep.subr.mxu0 0.0
  %551 = vmatpush1.msra.mxu0 0.0
  %552 = vmatprep.subr.mxu0 0.0
  %553 = vmatpush1.msra.mxu0 0.0
  %554 = vmatprep.subr.mxu0 0.0
  %555 = vmatpush1.msra.mxu0 0.0
  %556 = vmatprep.subr.mxu0 0.0
  %557 = vmatpush1.msra.mxu0 0.0
  %558 = vmatprep.mubr.f32.mxu0 0.0
  %559 = vmatmul.mubr.f32.gmra.mrb[0].mxu0 %v492
  %v560 = vpop.f32.mrb[0].mxu0
  %v561 = vadd.f32 %v489, %v560
  %v562 = vpop.f32.mrb[0].mxu0
  %563 = vdwg.mxu0
  %564 = vst.msk [vmem:[%s15] sm:$0xff] %vm61, %v561
  // Predicated region
  $region62: #{tpu_custom_call.1} parent=0 // pred_check
    _
  $region63: #{tpu_custom_call.1} parent=0 // pred_check_branch
    %566 = sbr.rel (0) target = $region65
  $region64: #{tpu_custom_call.1} parent=0 // pred_region
    _
  $region65: #{tpu_custom_call.1} parent=0 // pred_fallthru
    _
  // Predicated region
  $region66: #{tpu_custom_call.1} parent=0 // pred_check
    _
  $region67: #{tpu_custom_call.1} parent=0 // pred_check_branch
    %568 = sbr.rel (0) target = $region69
  $region68: #{tpu_custom_call.1} parent=0 // pred_region
    _
  $region69: #{tpu_custom_call.1} parent=0 // pred_fallthru
    _

</llo_original>
